<compile_context>
chip_gen: v6e
topology: v6e:2x2x1
jax: 0.10.0
libtpu: 0.0.40
codegen_flags: <defaults>
</compile_context>

<pallas_src>
import functools

import jax
import jax.numpy as jnp
from jax.experimental import pallas as pl
from jax.experimental.pallas import tpu as pltpu

# Logical (PyTorch) feature dims and their lane-padded counterparts.
DIMS = (392, 264, 120, 84, 10, 2)
PAD_DIMS = (392, 384, 128, 128, 128, 128)
OUT_DIM = DIMS[-1]
OUT_PAD = PAD_DIMS[-1]


def mlp_kernel(x_ref,
               w1_ref, b1_ref,
               w2_ref, b2_ref,
               w3_ref, b3_ref,
               w4_ref, b4_ref,
               w5_ref, b5_ref,
               o_ref):
    def layer(h_bf16, w_ref, b_ref, relu):
        # bf16 operands into the MXU, f32 accumulation; bias/ReLU epilogue in
        # f32 on the VPU, then a single bf16 cast of the layer output.
        acc = jnp.dot(h_bf16, w_ref[...], preferred_element_type=jnp.float32)
        acc = acc + b_ref[...]
        if relu:
            acc = jnp.maximum(acc, 0.0)
        return acc.astype(jnp.bfloat16)

    h = x_ref[...].astype(jnp.bfloat16)  # (TB, 392) bf16 (no-op if x is bf16)
    h = layer(h, w1_ref, b1_ref, True)   # -> (TB, 384)
    h = layer(h, w2_ref, b2_ref, True)   # -> (TB, 128)
    h = layer(h, w3_ref, b3_ref, True)   # -> (TB, 128)
    h = layer(h, w4_ref, b4_ref, True)   # -> (TB, 128)
    h = layer(h, w5_ref, b5_ref, False)  # -> (TB, 128) (only first 2 cols valid)
    o_ref[...] = h                       # bf16 store, whole unmasked vregs


def _pad_params(params):
    """Zero-pad params to lane-aligned dims; weights -> bf16, biases stay f32."""
    padded = []
    for li, (w, b) in enumerate(params):
        in_d, out_d = DIMS[li], DIMS[li + 1]
        in_p, out_p = PAD_DIMS[li], PAD_DIMS[li + 1]
        wp = jnp.zeros((in_p, out_p), jnp.bfloat16)
        wp = wp.at[:in_d, :out_d].set(w.astype(jnp.bfloat16))
        bp = jnp.zeros((1, out_p), jnp.float32)
        bp = bp.at[:, :out_d].set(b.astype(jnp.float32))
        padded.append((wp, bp))
    return padded


@functools.partial(jax.jit, static_argnames=("block_b",))
def mlp_forward(x, params, block_b=1024):
    """x: (B, 392) f32 or bf16; params: list of ((in, out) W, (1, out) b) f32."""
    B, D = x.shape
    assert D == DIMS[0]

    # Tile size: cap at block_b, round small batches up to a sublane multiple.
    tb = min(block_b, max(8, -(-B // 8) * 8))
    b_pad = -(-B // tb) * tb
    if b_pad != B:
        x = jnp.pad(x, ((0, b_pad - B), (0, 0)))

    operands = [x]
    for w, b in _pad_params(params):
        operands.append(w)
        operands.append(b)

    x_spec = pl.BlockSpec((tb, DIMS[0]), lambda i: (i, 0))
    # Weights / biases: full-array blocks with a constant index_map -> DMA'd
    # once and kept resident in VMEM across the whole batch grid.
    resident_specs = [pl.BlockSpec(a.shape, lambda i: (0, 0)) for a in operands[1:]]
    out_spec = pl.BlockSpec((tb, OUT_PAD), lambda i: (i, 0))

    out = pl.pallas_call(
        mlp_kernel,
        out_shape=jax.ShapeDtypeStruct((b_pad, OUT_PAD), jnp.bfloat16),
        grid=(b_pad // tb,),
        in_specs=[x_spec] + resident_specs,
        out_specs=out_spec,
        compiler_params=pltpu.CompilerParams(
            dimension_semantics=("parallel",),
            # At tb=1024: ~3.2 MB x-tiles (2 bufs), ~0.5 MB bf16 out, ~1 MB
            # resident weights, a few MB of intermediates -> well under 48 MiB.
            # 48 MiB also leaves headroom under v7x's 64 MiB physical VMEM and
            # overrides v5e's 16 MiB default scoped limit.
            vmem_limit_bytes=48 * 1024 * 1024),
    )(*operands)

    # Slice real rows / logits, upcast tiny (B, 2) result back to f32.
    return out[:B, :OUT_DIM].astype(jnp.float32)


def init_params(key):
    """Deterministic init matching nn.Linear shapes (stored as (in, out))."""
    params = []
    for i in range(len(DIMS) - 1):
        fan_in, fan_out = DIMS[i], DIMS[i + 1]
        key, kw, kb = jax.random.split(key, 3)
        bound = 1.0 / (fan_in ** 0.5)  # PyTorch Linear default init bound
        w = jax.random.uniform(kw, (fan_in, fan_out), jnp.float32, -bound, bound)
        b = jax.random.uniform(kb, (1, fan_out), jnp.float32, -bound, bound)
        params.append((w, b))
    return params


def mlp_reference(x, params):
    h = x
    for i, (w, b) in enumerate(params):
        h = h @ w + b
        if i < len(params) - 1:
            h = jnp.maximum(h, 0.0)
    return h


if __name__ == "__main__":
    key = jax.random.PRNGKey(0)
    key, kx1, kx2 = jax.random.split(key, 3)
    params = init_params(key)

    # Case 1: small batch, single grid step.
    B1 = 8
    x1 = jax.random.normal(kx1, (B1, 392), jnp.float32)
    out1 = jax.block_until_ready(mlp_forward(x1, params))
    ref1 = mlp_reference(x1, params)
    assert out1.shape == (B1, 2)
    # bf16 MXU operands / bf16 output store with f32 accumulation -> relaxed tol.
    assert jnp.allclose(out1, ref1, atol=5e-2, rtol=5e-2), (
        float(jnp.max(jnp.abs(out1 - ref1))))

    # Case 2: B > tile -> multi-step grid, batch padding, output slice path.
    B2 = 300
    x2 = jax.random.normal(kx2, (B2, 392), jnp.float32)
    out2 = jax.block_until_ready(mlp_forward(x2, params, block_b=128))
    ref2 = mlp_reference(x2, params)
    assert out2.shape == (B2, 2)
    assert jnp.allclose(out2, ref2, atol=5e-2, rtol=5e-2), (
        float(jnp.max(jnp.abs(out2 - ref2))))

    print("KERNEL_OK")
</pallas_src>

<mosaic_0001>
module attributes {stable_mosaic.version = 11 : i64} {
  func.func @mlp_kernel(%arg0: i32, %arg1: memref<8x392xf32, #tpu.memory_space<vmem>>, %arg2: memref<392x384xbf16, #tpu.memory_space<vmem>>, %arg3: memref<1x384xf32, #tpu.memory_space<vmem>>, %arg4: memref<384x128xbf16, #tpu.memory_space<vmem>>, %arg5: memref<1x128xf32, #tpu.memory_space<vmem>>, %arg6: memref<128x128xbf16, #tpu.memory_space<vmem>>, %arg7: memref<1x128xf32, #tpu.memory_space<vmem>>, %arg8: memref<128x128xbf16, #tpu.memory_space<vmem>>, %arg9: memref<1x128xf32, #tpu.memory_space<vmem>>, %arg10: memref<128x128xbf16, #tpu.memory_space<vmem>>, %arg11: memref<1x128xf32, #tpu.memory_space<vmem>>, %arg12: memref<8x128xbf16, #tpu.memory_space<vmem>>) attributes {dimension_semantics = [#tpu.dimension_semantics<parallel>], iteration_bounds = array<i64: 1>, scalar_prefetch = 0 : i64, scratch_operands = 0 : i64, tpu.core_type = #tpu.core_type<tc>, window_params = [{transform_indices = @transform_0, window_bounds = array<i64: 8, 392>}, {pipeline_mode = #tpu.pipeline_mode<synchronous>, transform_indices = @transform_1, window_bounds = array<i64: 392, 384>}, {pipeline_mode = #tpu.pipeline_mode<synchronous>, transform_indices = @transform_2, window_bounds = array<i64: 1, 384>}, {pipeline_mode = #tpu.pipeline_mode<synchronous>, transform_indices = @transform_3, window_bounds = array<i64: 384, 128>}, {pipeline_mode = #tpu.pipeline_mode<synchronous>, transform_indices = @transform_4, window_bounds = array<i64: 1, 128>}, {pipeline_mode = #tpu.pipeline_mode<synchronous>, transform_indices = @transform_5, window_bounds = array<i64: 128, 128>}, {pipeline_mode = #tpu.pipeline_mode<synchronous>, transform_indices = @transform_6, window_bounds = array<i64: 1, 128>}, {pipeline_mode = #tpu.pipeline_mode<synchronous>, transform_indices = @transform_7, window_bounds = array<i64: 128, 128>}, {pipeline_mode = #tpu.pipeline_mode<synchronous>, transform_indices = @transform_8, window_bounds = array<i64: 1, 128>}, {pipeline_mode = #tpu.pipeline_mode<synchronous>, transform_indices = @transform_9, window_bounds = array<i64: 128, 128>}, {pipeline_mode = #tpu.pipeline_mode<synchronous>, transform_indices = @transform_10, window_bounds = array<i64: 1, 128>}, {transform_indices = @transform_11, window_bounds = array<i64: 8, 128>}]} {
    %c0 = arith.constant 0 : index
    %c0_0 = arith.constant 0 : index
    %0 = vector.load %arg1[%c0, %c0_0] : memref<8x392xf32, #tpu.memory_space<vmem>>, vector<8x392xf32>
    %1 = arith.truncf %0 : vector<8x392xf32> to vector<8x392xbf16>
    %c0_1 = arith.constant 0 : index
    %c0_2 = arith.constant 0 : index
    %2 = vector.load %arg2[%c0_1, %c0_2] : memref<392x384xbf16, #tpu.memory_space<vmem>>, vector<392x384xbf16>
    %cst = arith.constant dense<0.000000e+00> : vector<8x384xf32>
    %3 = tpu.matmul %1, %2, %cst {dimension_numbers = #tpu.dot_dimension_numbers<[1], [0], [0], [1], [0, 0, 1, 1], [], []>} : vector<8x392xbf16>, vector<392x384xbf16>, vector<8x384xf32> -> vector<8x384xf32>
    %c0_3 = arith.constant 0 : index
    %c0_4 = arith.constant 0 : index
    %4 = vector.load %arg3[%c0_3, %c0_4] : memref<1x384xf32, #tpu.memory_space<vmem>>, vector<1x384xf32>
    %5 = vector.broadcast %4 : vector<1x384xf32> to vector<8x384xf32>
    %6 = arith.addf %3, %5 : vector<8x384xf32>
    %cst_5 = arith.constant 0.000000e+00 : f32
    %7 = vector.broadcast %cst_5 : f32 to vector<8x384xf32>
    %8 = arith.maximumf %6, %7 : vector<8x384xf32>
    %9 = arith.truncf %8 : vector<8x384xf32> to vector<8x384xbf16>
    %c0_6 = arith.constant 0 : index
    %c0_7 = arith.constant 0 : index
    %10 = vector.load %arg4[%c0_6, %c0_7] : memref<384x128xbf16, #tpu.memory_space<vmem>>, vector<384x128xbf16>
    %cst_8 = arith.constant dense<0.000000e+00> : vector<8x128xf32>
    %11 = tpu.matmul %9, %10, %cst_8 {dimension_numbers = #tpu.dot_dimension_numbers<[1], [0], [0], [1], [0, 0, 1, 1], [], []>} : vector<8x384xbf16>, vector<384x128xbf16>, vector<8x128xf32> -> vector<8x128xf32>
    %c0_9 = arith.constant 0 : index
    %c0_10 = arith.constant 0 : index
    %12 = vector.load %arg5[%c0_9, %c0_10] : memref<1x128xf32, #tpu.memory_space<vmem>>, vector<1x128xf32>
    %13 = vector.broadcast %12 : vector<1x128xf32> to vector<8x128xf32>
    %14 = arith.addf %11, %13 : vector<8x128xf32>
    %cst_11 = arith.constant 0.000000e+00 : f32
    %15 = vector.broadcast %cst_11 : f32 to vector<8x128xf32>
    %16 = arith.maximumf %14, %15 : vector<8x128xf32>
    %17 = arith.truncf %16 : vector<8x128xf32> to vector<8x128xbf16>
    %c0_12 = arith.constant 0 : index
    %c0_13 = arith.constant 0 : index
    %18 = vector.load %arg6[%c0_12, %c0_13] : memref<128x128xbf16, #tpu.memory_space<vmem>>, vector<128x128xbf16>
    %cst_14 = arith.constant dense<0.000000e+00> : vector<8x128xf32>
    %19 = tpu.matmul %17, %18, %cst_14 {dimension_numbers = #tpu.dot_dimension_numbers<[1], [0], [0], [1], [0, 0, 1, 1], [], []>} : vector<8x128xbf16>, vector<128x128xbf16>, vector<8x128xf32> -> vector<8x128xf32>
    %c0_15 = arith.constant 0 : index
    %c0_16 = arith.constant 0 : index
    %20 = vector.load %arg7[%c0_15, %c0_16] : memref<1x128xf32, #tpu.memory_space<vmem>>, vector<1x128xf32>
    %21 = vector.broadcast %20 : vector<1x128xf32> to vector<8x128xf32>
    %22 = arith.addf %19, %21 : vector<8x128xf32>
    %cst_17 = arith.constant 0.000000e+00 : f32
    %23 = vector.broadcast %cst_17 : f32 to vector<8x128xf32>
    %24 = arith.maximumf %22, %23 : vector<8x128xf32>
    %25 = arith.truncf %24 : vector<8x128xf32> to vector<8x128xbf16>
    %c0_18 = arith.constant 0 : index
    %c0_19 = arith.constant 0 : index
    %26 = vector.load %arg8[%c0_18, %c0_19] : memref<128x128xbf16, #tpu.memory_space<vmem>>, vector<128x128xbf16>
    %cst_20 = arith.constant dense<0.000000e+00> : vector<8x128xf32>
    %27 = tpu.matmul %25, %26, %cst_20 {dimension_numbers = #tpu.dot_dimension_numbers<[1], [0], [0], [1], [0, 0, 1, 1], [], []>} : vector<8x128xbf16>, vector<128x128xbf16>, vector<8x128xf32> -> vector<8x128xf32>
    %c0_21 = arith.constant 0 : index
    %c0_22 = arith.constant 0 : index
    %28 = vector.load %arg9[%c0_21, %c0_22] : memref<1x128xf32, #tpu.memory_space<vmem>>, vector<1x128xf32>
    %29 = vector.broadcast %28 : vector<1x128xf32> to vector<8x128xf32>
    %30 = arith.addf %27, %29 : vector<8x128xf32>
    %cst_23 = arith.constant 0.000000e+00 : f32
    %31 = vector.broadcast %cst_23 : f32 to vector<8x128xf32>
    %32 = arith.maximumf %30, %31 : vector<8x128xf32>
    %33 = arith.truncf %32 : vector<8x128xf32> to vector<8x128xbf16>
    %c0_24 = arith.constant 0 : index
    %c0_25 = arith.constant 0 : index
    %34 = vector.load %arg10[%c0_24, %c0_25] : memref<128x128xbf16, #tpu.memory_space<vmem>>, vector<128x128xbf16>
    %cst_26 = arith.constant dense<0.000000e+00> : vector<8x128xf32>
    %35 = tpu.matmul %33, %34, %cst_26 {dimension_numbers = #tpu.dot_dimension_numbers<[1], [0], [0], [1], [0, 0, 1, 1], [], []>} : vector<8x128xbf16>, vector<128x128xbf16>, vector<8x128xf32> -> vector<8x128xf32>
    %c0_27 = arith.constant 0 : index
    %c0_28 = arith.constant 0 : index
    %36 = vector.load %arg11[%c0_27, %c0_28] : memref<1x128xf32, #tpu.memory_space<vmem>>, vector<1x128xf32>
    %37 = vector.broadcast %36 : vector<1x128xf32> to vector<8x128xf32>
    %38 = arith.addf %35, %37 : vector<8x128xf32>
    %39 = arith.truncf %38 : vector<8x128xf32> to vector<8x128xbf16>
    %c0_29 = arith.constant 0 : index
    %c0_30 = arith.constant 0 : index
    %40 = vector.load %arg12[%c0_29, %c0_30] : memref<8x128xbf16, #tpu.memory_space<vmem>>, vector<8x128xbf16>
    tpu.vector_store %arg12[%c0_29, %c0_30], %39 {strides = array<i32>} : memref<8x128xbf16, #tpu.memory_space<vmem>>, vector<8x128xbf16>,
    return
  }
  func.func @transform_0(%arg0: i32) -> (i32, i32) {
    %c0_i32 = arith.constant 0 : i32
    %c0_i32_0 = arith.constant 0 : i32
    return %arg0, %c0_i32 : i32, i32
  }
  func.func @transform_1(%arg0: i32) -> (i32, i32) {
    %c0_i32 = arith.constant 0 : i32
    %c0_i32_0 = arith.constant 0 : i32
    %c0_i32_1 = arith.constant 0 : i32
    return %c0_i32, %c0_i32_0 : i32, i32
  }
  func.func @transform_2(%arg0: i32) -> (i32, i32) {
    %c0_i32 = arith.constant 0 : i32
    %c0_i32_0 = arith.constant 0 : i32
    %c0_i32_1 = arith.constant 0 : i32
    return %c0_i32, %c0_i32_0 : i32, i32
  }
  func.func @transform_3(%arg0: i32) -> (i32, i32) {
    %c0_i32 = arith.constant 0 : i32
    %c0_i32_0 = arith.constant 0 : i32
    %c0_i32_1 = arith.constant 0 : i32
    return %c0_i32, %c0_i32_0 : i32, i32
  }
  func.func @transform_4(%arg0: i32) -> (i32, i32) {
    %c0_i32 = arith.constant 0 : i32
    %c0_i32_0 = arith.constant 0 : i32
    %c0_i32_1 = arith.constant 0 : i32
    return %c0_i32, %c0_i32_0 : i32, i32
  }
  func.func @transform_5(%arg0: i32) -> (i32, i32) {
    %c0_i32 = arith.constant 0 : i32
    %c0_i32_0 = arith.constant 0 : i32
    %c0_i32_1 = arith.constant 0 : i32
    return %c0_i32, %c0_i32_0 : i32, i32
  }
  func.func @transform_6(%arg0: i32) -> (i32, i32) {
    %c0_i32 = arith.constant 0 : i32
    %c0_i32_0 = arith.constant 0 : i32
    %c0_i32_1 = arith.constant 0 : i32
    return %c0_i32, %c0_i32_0 : i32, i32
  }
  func.func @transform_7(%arg0: i32) -> (i32, i32) {
    %c0_i32 = arith.constant 0 : i32
    %c0_i32_0 = arith.constant 0 : i32
    %c0_i32_1 = arith.constant 0 : i32
    return %c0_i32, %c0_i32_0 : i32, i32
  }
  func.func @transform_8(%arg0: i32) -> (i32, i32) {
    %c0_i32 = arith.constant 0 : i32
    %c0_i32_0 = arith.constant 0 : i32
    %c0_i32_1 = arith.constant 0 : i32
    return %c0_i32, %c0_i32_0 : i32, i32
  }
  func.func @transform_9(%arg0: i32) -> (i32, i32) {
    %c0_i32 = arith.constant 0 : i32
    %c0_i32_0 = arith.constant 0 : i32
    %c0_i32_1 = arith.constant 0 : i32
    return %c0_i32, %c0_i32_0 : i32, i32
  }
  func.func @transform_10(%arg0: i32) -> (i32, i32) {
    %c0_i32 = arith.constant 0 : i32
    %c0_i32_0 = arith.constant 0 : i32
    %c0_i32_1 = arith.constant 0 : i32
    return %c0_i32, %c0_i32_0 : i32, i32
  }
  func.func @transform_11(%arg0: i32) -> (i32, i32) {
    %c0_i32 = arith.constant 0 : i32
    %c0_i32_0 = arith.constant 0 : i32
    return %arg0, %c0_i32 : i32, i32
  }
}

</mosaic_0001>

<llo_original>
// kernel: mlp_forward.1
$region0: #{mlp_forward.1}
  #allocation0 [shape = 'u32[]', space=smem, size = 0x4, offset = 0x4, fixed_abs, tag = 'smem constant byte address 0x4 - core index']
  #allocation1 [shape = 'u32[144,128]{1,0:T(1,128)}', space=vmem, size = 0x12000, scoped, tag = 'internal scratch']
  %s0 = inlined_call_operand.vmem [shape: f32[8,392], index: 0, kind: input, shape index: {}]
  %s1 = inlined_call_operand.vmem [shape: bf16[392,384], index: 1, kind: input, shape index: {}]
  %s2 = inlined_call_operand.vmem [shape: f32[1,384], index: 2, kind: input, shape index: {}]
  %s3 = inlined_call_operand.vmem [shape: bf16[384,128], index: 3, kind: input, shape index: {}]
  %s4 = inlined_call_operand.vmem [shape: f32[1,128], index: 4, kind: input, shape index: {}]
  %s5 = inlined_call_operand.vmem [shape: bf16[128,128], index: 5, kind: input, shape index: {}]
  %s6 = inlined_call_operand.vmem [shape: f32[1,128], index: 6, kind: input, shape index: {}]
  %s7 = inlined_call_operand.vmem [shape: bf16[128,128], index: 7, kind: input, shape index: {}]
  %s8 = inlined_call_operand.vmem [shape: f32[1,128], index: 8, kind: input, shape index: {}]
  %s9 = inlined_call_operand.vmem [shape: bf16[128,128], index: 9, kind: input, shape index: {}]
  %s10 = inlined_call_operand.vmem [shape: f32[1,128], index: 10, kind: input, shape index: {}]
  %s11 = inlined_call_operand.vmem [shape: bf16[8,128], index: 11, kind: output, shape index: {}]
  %s12 = sld [smem:[#allocation0]]
  $region54: #{mlp_forward.1} parent=0
    _
  %s14 = ssub.s32 1, %s12
  %s15 = scalar_select 0, %s14, %s12
  // Predicated region
  $region2: #{mlp_forward.1} parent=0 // pred_check
    _
  $region3: #{mlp_forward.1} parent=0 // pred_check_branch
    %17 = sbr.rel (0) target = $region5
  $region4: #{mlp_forward.1} parent=0 // pred_region
    _
  $region5: #{mlp_forward.1} parent=0 // pred_fallthru
    _
  // Predicated region
  $region6: #{mlp_forward.1} parent=0 // pred_check
    _
  $region7: #{mlp_forward.1} parent=0 // pred_check_branch
    %19 = sbr.rel (0) target = $region9
  $region8: #{mlp_forward.1} parent=0 // pred_region
    _
  $region9: #{mlp_forward.1} parent=0 // pred_fallthru
    _
  // Predicated region
  $region10: #{mlp_forward.1} parent=0 // pred_check
    _
  $region11: #{mlp_forward.1} parent=0 // pred_check_branch
    %21 = sbr.rel (0) target = $region13
  $region12: #{mlp_forward.1} parent=0 // pred_region
    _
  $region13: #{mlp_forward.1} parent=0 // pred_fallthru
    _
  // Predicated region
  $region14: #{mlp_forward.1} parent=0 // pred_check
    _
  $region15: #{mlp_forward.1} parent=0 // pred_check_branch
    %23 = sbr.rel (0) target = $region17
  $region16: #{mlp_forward.1} parent=0 // pred_region
    _
  $region17: #{mlp_forward.1} parent=0 // pred_fallthru
    _
  // Predicated region
  $region18: #{mlp_forward.1} parent=0 // pred_check
    _
  $region19: #{mlp_forward.1} parent=0 // pred_check_branch
    %25 = sbr.rel (0) target = $region21
  $region20: #{mlp_forward.1} parent=0 // pred_region
    _
  $region21: #{mlp_forward.1} parent=0 // pred_fallthru
    _
  // Predicated region
  $region22: #{mlp_forward.1} parent=0 // pred_check
    _
  $region23: #{mlp_forward.1} parent=0 // pred_check_branch
    %27 = sbr.rel (0) target = $region25
  $region24: #{mlp_forward.1} parent=0 // pred_region
    _
  $region25: #{mlp_forward.1} parent=0 // pred_fallthru
    _
  // Predicated region
  $region26: #{mlp_forward.1} parent=0 // pred_check
    _
  $region27: #{mlp_forward.1} parent=0 // pred_check_branch
    %29 = sbr.rel (0) target = $region29
  $region28: #{mlp_forward.1} parent=0 // pred_region
    _
  $region29: #{mlp_forward.1} parent=0 // pred_fallthru
    _
  // Predicated region
  $region30: #{mlp_forward.1} parent=0 // pred_check
    _
  $region31: #{mlp_forward.1} parent=0 // pred_check_branch
    %31 = sbr.rel (0) target = $region33
  $region32: #{mlp_forward.1} parent=0 // pred_region
    _
  $region33: #{mlp_forward.1} parent=0 // pred_fallthru
    _
  // Predicated region
  $region34: #{mlp_forward.1} parent=0 // pred_check
    _
  $region35: #{mlp_forward.1} parent=0 // pred_check_branch
    %33 = sbr.rel (0) target = $region37
  $region36: #{mlp_forward.1} parent=0 // pred_region
    _
  $region37: #{mlp_forward.1} parent=0 // pred_fallthru
    _
  // Predicated region
  $region38: #{mlp_forward.1} parent=0 // pred_check
    _
  $region39: #{mlp_forward.1} parent=0 // pred_check_branch
    %35 = sbr.rel (0) target = $region41
  $region40: #{mlp_forward.1} parent=0 // pred_region
    _
  $region41: #{mlp_forward.1} parent=0 // pred_fallthru
    _
  // Predicated region
  $region42: #{mlp_forward.1} parent=0 // pred_check
    _
  $region43: #{mlp_forward.1} parent=0 // pred_check_branch
    %37 = sbr.rel (0) target = $region45
  $region44: #{mlp_forward.1} parent=0 // pred_region
    _
  $region45: #{mlp_forward.1} parent=0 // pred_fallthru
    _
  %v39 = vld [vmem:[%s0] sm:$0xff]
  %v40 = vld [vmem:[%s0 + $0x8] sm:$0xff]
  %v41 = vld [vmem:[%s0 + $0x10] sm:$0xff]
  %v42 = vld [vmem:[%s0 + $0x18] sm:$0xff]
  %v43 = vpack.c.bf16 %v39, %v39
  %v44 = vpack.c.bf16 %v40, %v40
  %v45 = vpack.c.bf16 %v41, %v41
  %v46 = vpack.c.bf16 %v42, %v42
  %v47 = vld [vmem:[%s1] sm:$0xff]
  %v48 = vld [vmem:[%s1 + $0x8] sm:$0xf]
  %v49 = vld [vmem:[%s1 + $0xc] sm:$0xff]
  %v50 = vld [vmem:[%s1 + $0x14] sm:$0xf]
  %v51 = vld [vmem:[%s1 + $0x18] sm:$0xff]
  %v52 = vld [vmem:[%s1 + $0x20] sm:$0xf]
  %v53 = vld [vmem:[%s1 + $0x24] sm:$0xff]
  %v54 = vld [vmem:[%s1 + $0x2c] sm:$0xf]
  %v55 = vld [vmem:[%s1 + $0x30] sm:$0xff]
  %v56 = vld [vmem:[%s1 + $0x38] sm:$0xf]
  %v57 = vld [vmem:[%s1 + $0x3c] sm:$0xff]
  %v58 = vld [vmem:[%s1 + $0x44] sm:$0xf]
  %v59 = vld [vmem:[%s1 + $0x48] sm:$0xff]
  %v60 = vld [vmem:[%s1 + $0x50] sm:$0xf]
  %v61 = vld [vmem:[%s1 + $0x54] sm:$0xff]
  %v62 = vld [vmem:[%s1 + $0x5c] sm:$0xf]
  %v63 = vld [vmem:[%s1 + $0x60] sm:$0xff]
  %v64 = vld [vmem:[%s1 + $0x68] sm:$0xf]
  %v65 = vld [vmem:[%s1 + $0x6c] sm:$0xff]
  %v66 = vld [vmem:[%s1 + $0x74] sm:$0xf]
  %v67 = vld [vmem:[%s1 + $0x78] sm:$0xff]
  %v68 = vld [vmem:[%s1 + $0x80] sm:$0xf]
  %v69 = vld [vmem:[%s1 + $0x84] sm:$0xff]
  %v70 = vld [vmem:[%s1 + $0x8c] sm:$0xf]
  %v71 = vld [vmem:[%s1 + $0x90] sm:$0xff]
  %v72 = vld [vmem:[%s1 + $0x98] sm:$0xf]
  %v73 = vld [vmem:[%s1 + $0x9c] sm:$0xff]
  %v74 = vld [vmem:[%s1 + $0xa4] sm:$0xf]
  %v75 = vld [vmem:[%s1 + $0xa8] sm:$0xff]
  %v76 = vld [vmem:[%s1 + $0xb0] sm:$0xf]
  %v77 = vld [vmem:[%s1 + $0xb4] sm:$0xff]
  %v78 = vld [vmem:[%s1 + $0xbc] sm:$0xf]
  %v79 = vld [vmem:[%s1 + $0xc0] sm:$0xff]
  %v80 = vld [vmem:[%s1 + $0xc8] sm:$0xf]
  %v81 = vld [vmem:[%s1 + $0xcc] sm:$0xff]
  %v82 = vld [vmem:[%s1 + $0xd4] sm:$0xf]
  %v83 = vld [vmem:[%s1 + $0xd8] sm:$0xff]
  %v84 = vld [vmem:[%s1 + $0xe0] sm:$0xf]
  %v85 = vld [vmem:[%s1 + $0xe4] sm:$0xff]
  %v86 = vld [vmem:[%s1 + $0xec] sm:$0xf]
  %v87 = vld [vmem:[%s1 + $0xf0] sm:$0xff]
  %v88 = vld [vmem:[%s1 + $0xf8] sm:$0xf]
  %v89 = vld [vmem:[%s1 + $0xfc] sm:$0xff]
  %v90 = vld [vmem:[%s1 + $0x104] sm:$0xf]
  %v91 = vld [vmem:[%s1 + $0x108] sm:$0xff]
  %v92 = vld [vmem:[%s1 + $0x110] sm:$0xf]
  %v93 = vld [vmem:[%s1 + $0x114] sm:$0xff]
  %v94 = vld [vmem:[%s1 + $0x11c] sm:$0xf]
  %v95 = vld [vmem:[%s1 + $0x120] sm:$0xff]
  %v96 = vld [vmem:[%s1 + $0x128] sm:$0xf]
  %v97 = vld [vmem:[%s1 + $0x12c] sm:$0xff]
  %v98 = vld [vmem:[%s1 + $0x134] sm:$0xf]
  %v99 = vld [vmem:[%s1 + $0x138] sm:$0xff]
  %v100 = vld [vmem:[%s1 + $0x140] sm:$0xf]
  %v101 = vld [vmem:[%s1 + $0x144] sm:$0xff]
  %v102 = vld [vmem:[%s1 + $0x14c] sm:$0xf]
  %v103 = vld [vmem:[%s1 + $0x150] sm:$0xff]
  %v104 = vld [vmem:[%s1 + $0x158] sm:$0xf]
  %v105 = vld [vmem:[%s1 + $0x15c] sm:$0xff]
  %v106 = vld [vmem:[%s1 + $0x164] sm:$0xf]
  %v107 = vld [vmem:[%s1 + $0x168] sm:$0xff]
  %v108 = vld [vmem:[%s1 + $0x170] sm:$0xf]
  %v109 = vld [vmem:[%s1 + $0x174] sm:$0xff]
  %v110 = vld [vmem:[%s1 + $0x17c] sm:$0xf]
  %v111 = vld [vmem:[%s1 + $0x180] sm:$0xff]
  %v112 = vld [vmem:[%s1 + $0x188] sm:$0xf]
  %v113 = vld [vmem:[%s1 + $0x18c] sm:$0xff]
  %v114 = vld [vmem:[%s1 + $0x194] sm:$0xf]
  %v115 = vld [vmem:[%s1 + $0x198] sm:$0xff]
  %v116 = vld [vmem:[%s1 + $0x1a0] sm:$0xf]
  %v117 = vld [vmem:[%s1 + $0x1a4] sm:$0xff]
  %v118 = vld [vmem:[%s1 + $0x1ac] sm:$0xf]
  %v119 = vld [vmem:[%s1 + $0x1b0] sm:$0xff]
  %v120 = vld [vmem:[%s1 + $0x1b8] sm:$0xf]
  %v121 = vld [vmem:[%s1 + $0x1bc] sm:$0xff]
  %v122 = vld [vmem:[%s1 + $0x1c4] sm:$0xf]
  %v123 = vld [vmem:[%s1 + $0x1c8] sm:$0xff]
  %v124 = vld [vmem:[%s1 + $0x1d0] sm:$0xf]
  %v125 = vld [vmem:[%s1 + $0x1d4] sm:$0xff]
  %v126 = vld [vmem:[%s1 + $0x1dc] sm:$0xf]
  %v127 = vld [vmem:[%s1 + $0x1e0] sm:$0xff]
  %v128 = vld [vmem:[%s1 + $0x1e8] sm:$0xf]
  %v129 = vld [vmem:[%s1 + $0x1ec] sm:$0xff]
  %v130 = vld [vmem:[%s1 + $0x1f4] sm:$0xf]
  %v131 = vld [vmem:[%s1 + $0x1f8] sm:$0xff]
  %v132 = vld [vmem:[%s1 + $0x200] sm:$0xf]
  %v133 = vld [vmem:[%s1 + $0x204] sm:$0xff]
  %v134 = vld [vmem:[%s1 + $0x20c] sm:$0xf]
  %v135 = vld [vmem:[%s1 + $0x210] sm:$0xff]
  %v136 = vld [vmem:[%s1 + $0x218] sm:$0xf]
  %v137 = vld [vmem:[%s1 + $0x21c] sm:$0xff]
  %v138 = vld [vmem:[%s1 + $0x224] sm:$0xf]
  %v139 = vld [vmem:[%s1 + $0x228] sm:$0xff]
  %v140 = vld [vmem:[%s1 + $0x230] sm:$0xf]
  %v141 = vld [vmem:[%s1 + $0x234] sm:$0xff]
  %v142 = vld [vmem:[%s1 + $0x23c] sm:$0xf]
  %v143 = vld [vmem:[%s1 + $0x240] sm:$0xff]
  %v144 = vld [vmem:[%s1 + $0x248] sm:$0xf]
  %v145 = vld [vmem:[%s2] sm:$0x7]
  %v147 = vlaneseq
  %v148 = vshrl.u32 %v147, 7
  %v149 = vsub.s32 0, %v148
  %v150 = vrot.slane %v145, %v149
  %v151 = vlaneseq
  %v152 = vshrl.u32 %v151, 7
  %v153 = vsub.s32 1, %v152
  %v154 = vrot.slane %v145, %v153
  %v155 = vlaneseq
  %v156 = vshrl.u32 %v155, 7
  %v157 = vsub.s32 2, %v156
  %v158 = vrot.slane %v145, %v157
  %v260 = vunpack.c.l.b16 %v47
  %v261 = vunpack.c.h.b16 %v47
  %v262 = vunpack.c.l.b16 %v48
  %v263 = vunpack.c.l.b16 %v49
  %v264 = vunpack.c.h.b16 %v49
  %v265 = vunpack.c.l.b16 %v50
  %v266 = vunpack.c.l.b16 %v51
  %v267 = vunpack.c.h.b16 %v51
  %v268 = vunpack.c.l.b16 %v52
  %v269 = vunpack.c.l.b16 %v53
  %v270 = vunpack.c.h.b16 %v53
  %v271 = vunpack.c.l.b16 %v54
  %v272 = vunpack.c.l.b16 %v55
  %v273 = vunpack.c.h.b16 %v55
  %v274 = vunpack.c.l.b16 %v56
  %v275 = vunpack.c.l.b16 %v57
  %v276 = vunpack.c.h.b16 %v57
  %v277 = vunpack.c.l.b16 %v58
  %v278 = vunpack.c.l.b16 %v59
  %v279 = vunpack.c.h.b16 %v59
  %v280 = vunpack.c.l.b16 %v60
  %v281 = vunpack.c.l.b16 %v61
  %v282 = vunpack.c.h.b16 %v61
  %v283 = vunpack.c.l.b16 %v62
  %v284 = vunpack.c.l.b16 %v63
  %v285 = vunpack.c.h.b16 %v63
  %v286 = vunpack.c.l.b16 %v64
  %v287 = vunpack.c.l.b16 %v65
  %v288 = vunpack.c.h.b16 %v65
  %v289 = vunpack.c.l.b16 %v66
  %v290 = vunpack.c.l.b16 %v67
  %v291 = vunpack.c.h.b16 %v67
  %v292 = vunpack.c.l.b16 %v68
  %v293 = vunpack.c.l.b16 %v69
  %v294 = vunpack.c.h.b16 %v69
  %v295 = vunpack.c.l.b16 %v70
  %v296 = vunpack.c.l.b16 %v71
  %v297 = vunpack.c.h.b16 %v71
  %v298 = vunpack.c.l.b16 %v72
  %v299 = vunpack.c.l.b16 %v73
  %v300 = vunpack.c.h.b16 %v73
  %v301 = vunpack.c.l.b16 %v74
  %v302 = vunpack.c.l.b16 %v75
  %v303 = vunpack.c.h.b16 %v75
  %v304 = vunpack.c.l.b16 %v76
  %v305 = vunpack.c.l.b16 %v77
  %v306 = vunpack.c.h.b16 %v77
  %v307 = vunpack.c.l.b16 %v78
  %v308 = vunpack.c.l.b16 %v79
  %v309 = vunpack.c.h.b16 %v79
  %v310 = vunpack.c.l.b16 %v80
  %v311 = vunpack.c.l.b16 %v81
  %v312 = vunpack.c.h.b16 %v81
  %v313 = vunpack.c.l.b16 %v82
  %v314 = vunpack.c.l.b16 %v83
  %v315 = vunpack.c.h.b16 %v83
  %v316 = vunpack.c.l.b16 %v84
  %v317 = vunpack.c.l.b16 %v85
  %v318 = vunpack.c.h.b16 %v85
  %v319 = vunpack.c.l.b16 %v86
  %v320 = vunpack.c.l.b16 %v87
  %v321 = vunpack.c.h.b16 %v87
  %v322 = vunpack.c.l.b16 %v88
  %v323 = vunpack.c.l.b16 %v89
  %v324 = vunpack.c.h.b16 %v89
  %v325 = vunpack.c.l.b16 %v90
  %v326 = vunpack.c.l.b16 %v91
  %v327 = vunpack.c.h.b16 %v91
  %v328 = vunpack.c.l.b16 %v92
  %v329 = vunpack.c.l.b16 %v93
  %v330 = vunpack.c.h.b16 %v93
  %v331 = vunpack.c.l.b16 %v94
  %v332 = vunpack.c.l.b16 %v95
  %v333 = vunpack.c.h.b16 %v95
  %v334 = vunpack.c.l.b16 %v96
  %v335 = vunpack.c.l.b16 %v97
  %v336 = vunpack.c.h.b16 %v97
  %v337 = vunpack.c.l.b16 %v98
  %v338 = vunpack.c.l.b16 %v99
  %v339 = vunpack.c.h.b16 %v99
  %v340 = vunpack.c.l.b16 %v100
  %v341 = vunpack.c.l.b16 %v101
  %v342 = vunpack.c.h.b16 %v101
  %v343 = vunpack.c.l.b16 %v102
  %v344 = vunpack.c.l.b16 %v103
  %v345 = vunpack.c.h.b16 %v103
  %v346 = vunpack.c.l.b16 %v104
  %v347 = vunpack.c.l.b16 %v105
  %v348 = vunpack.c.h.b16 %v105
  %v349 = vunpack.c.l.b16 %v106
  %v350 = vunpack.c.l.b16 %v107
  %v351 = vunpack.c.h.b16 %v107
  %v352 = vunpack.c.l.b16 %v108
  %v353 = vunpack.c.l.b16 %v109
  %v354 = vunpack.c.h.b16 %v109
  %v355 = vunpack.c.l.b16 %v110
  %v356 = vunpack.c.l.b16 %v111
  %v357 = vunpack.c.h.b16 %v111
  %v358 = vunpack.c.l.b16 %v112
  %v359 = vunpack.c.l.b16 %v113
  %v360 = vunpack.c.h.b16 %v113
  %v361 = vunpack.c.l.b16 %v114
  %v362 = vunpack.c.l.b16 %v115
  %v363 = vunpack.c.h.b16 %v115
  %v364 = vunpack.c.l.b16 %v116
  %v365 = vunpack.c.l.b16 %v117
  %v366 = vunpack.c.h.b16 %v117
  %v367 = vunpack.c.l.b16 %v118
  %v368 = vunpack.c.l.b16 %v119
  %v369 = vunpack.c.h.b16 %v119
  %v370 = vunpack.c.l.b16 %v120
  %v371 = vunpack.c.l.b16 %v121
  %v372 = vunpack.c.h.b16 %v121
  %v373 = vunpack.c.l.b16 %v122
  %v374 = vunpack.c.l.b16 %v123
  %v375 = vunpack.c.h.b16 %v123
  %v376 = vunpack.c.l.b16 %v124
  %v377 = vunpack.c.l.b16 %v125
  %v378 = vunpack.c.h.b16 %v125
  %v379 = vunpack.c.l.b16 %v126
  %v380 = vunpack.c.l.b16 %v127
  %v381 = vunpack.c.h.b16 %v127
  %v382 = vunpack.c.l.b16 %v128
  %v383 = vunpack.c.l.b16 %v129
  %v384 = vunpack.c.h.b16 %v129
  %v385 = vunpack.c.l.b16 %v130
  %v386 = vunpack.c.l.b16 %v131
  %v387 = vunpack.c.h.b16 %v131
  %v388 = vunpack.c.l.b16 %v132
  %v389 = vunpack.c.l.b16 %v133
  %v390 = vunpack.c.h.b16 %v133
  %v391 = vunpack.c.l.b16 %v134
  %v392 = vunpack.c.l.b16 %v135
  %v393 = vunpack.c.h.b16 %v135
  %v394 = vunpack.c.l.b16 %v136
  %v395 = vunpack.c.l.b16 %v137
  %v396 = vunpack.c.h.b16 %v137
  %v397 = vunpack.c.l.b16 %v138
  %v398 = vunpack.c.l.b16 %v139
  %v399 = vunpack.c.h.b16 %v139
  %v400 = vunpack.c.l.b16 %v140
  %v401 = vunpack.c.l.b16 %v141
  %v402 = vunpack.c.h.b16 %v141
  %v403 = vunpack.c.l.b16 %v142
  %v404 = vunpack.c.l.b16 %v143
  %v405 = vunpack.c.h.b16 %v143
  %v406 = vunpack.c.l.b16 %v144
  %v407 = vpack.c.b16 %v263, %v260
  %v408 = vpack.c.b16 %v264, %v261
  %v409 = vpack.c.b16 %v265, %v262
  %v410 = vpack.c.b16 %v269, %v266
  %v411 = vpack.c.b16 %v270, %v267
  %v412 = vpack.c.b16 %v271, %v268
  %v413 = vpack.c.b16 %v275, %v272
  %v414 = vpack.c.b16 %v276, %v273
  %v415 = vpack.c.b16 %v277, %v274
  %v416 = vpack.c.b16 %v281, %v278
  %v417 = vpack.c.b16 %v282, %v279
  %v418 = vpack.c.b16 %v283, %v280
  %v419 = vpack.c.b16 %v287, %v284
  %v420 = vpack.c.b16 %v288, %v285
  %v421 = vpack.c.b16 %v289, %v286
  %v422 = vpack.c.b16 %v293, %v290
  %v423 = vpack.c.b16 %v294, %v291
  %v424 = vpack.c.b16 %v295, %v292
  %v425 = vpack.c.b16 %v299, %v296
  %v426 = vpack.c.b16 %v300, %v297
  %v427 = vpack.c.b16 %v301, %v298
  %v428 = vpack.c.b16 %v305, %v302
  %v429 = vpack.c.b16 %v306, %v303
  %v430 = vpack.c.b16 %v307, %v304
  %v431 = vpack.c.b16 %v311, %v308
  %v432 = vpack.c.b16 %v312, %v309
  %v433 = vpack.c.b16 %v313, %v310
  %v434 = vpack.c.b16 %v317, %v314
  %v435 = vpack.c.b16 %v318, %v315
  %v436 = vpack.c.b16 %v319, %v316
  %v437 = vpack.c.b16 %v323, %v320
  %v438 = vpack.c.b16 %v324, %v321
  %v439 = vpack.c.b16 %v325, %v322
  %v440 = vpack.c.b16 %v329, %v326
  %v441 = vpack.c.b16 %v330, %v327
  %v442 = vpack.c.b16 %v331, %v328
  %v443 = vpack.c.b16 %v335, %v332
  %v444 = vpack.c.b16 %v336, %v333
  %v445 = vpack.c.b16 %v337, %v334
  %v446 = vpack.c.b16 %v341, %v338
  %v447 = vpack.c.b16 %v342, %v339
  %v448 = vpack.c.b16 %v343, %v340
  %v449 = vpack.c.b16 %v347, %v344
  %v450 = vpack.c.b16 %v348, %v345
  %v451 = vpack.c.b16 %v349, %v346
  %v452 = vpack.c.b16 %v353, %v350
  %v453 = vpack.c.b16 %v354, %v351
  %v454 = vpack.c.b16 %v355, %v352
  %v455 = vpack.c.b16 %v359, %v356
  %v456 = vpack.c.b16 %v360, %v357
  %v457 = vpack.c.b16 %v361, %v358
  %v458 = vpack.c.b16 %v365, %v362
  %v459 = vpack.c.b16 %v366, %v363
  %v460 = vpack.c.b16 %v367, %v364
  %v461 = vpack.c.b16 %v371, %v368
  %v462 = vpack.c.b16 %v372, %v369
  %v463 = vpack.c.b16 %v373, %v370
  %v464 = vpack.c.b16 %v377, %v374
  %v465 = vpack.c.b16 %v378, %v375
  %v466 = vpack.c.b16 %v379, %v376
  %v467 = vpack.c.b16 %v383, %v380
  %v468 = vpack.c.b16 %v384, %v381
  %v469 = vpack.c.b16 %v385, %v382
  %v470 = vpack.c.b16 %v389, %v386
  %v471 = vpack.c.b16 %v390, %v387
  %v472 = vpack.c.b16 %v391, %v388
  %v473 = vpack.c.b16 %v395, %v392
  %v474 = vpack.c.b16 %v396, %v393
  %v475 = vpack.c.b16 %v397, %v394
  %v476 = vpack.c.b16 %v401, %v398
  %v477 = vpack.c.b16 %v402, %v399
  %v478 = vpack.c.b16 %v403, %v400
  %v479 = vpack.c.b16 %v404, %v404
  %v480 = vpack.c.b16 %v405, %v405
  %v481 = vpack.c.b16 %v406, %v406
  %vm554 = vcmask 64512
  %v556 = vsel %vm554, %v46, 0
  %vm558 = vcmask 1043456
  %v560 = vsel %vm558, %v479, 0
  %v563 = vsel %vm558, %v480, 0
  %v566 = vsel %vm558, %v481, 0
  %568 = vmatprep.subr.bf16.mxu0 %v429
  %569 = vmatpush1.bf16.msra.mxu0 %v428
  %570 = vmatprep.subr.bf16.mxu0 %v426
  %571 = vmatpush1.bf16.msra.mxu0 %v425
  %572 = vmatprep.subr.bf16.mxu0 %v423
  %573 = vmatpush1.bf16.msra.mxu0 %v422
  %574 = vmatprep.subr.bf16.mxu0 %v420
  %575 = vmatpush1.bf16.msra.mxu0 %v419
  %576 = vmatprep.subr.bf16.mxu0 %v417
  %577 = vmatpush1.bf16.msra.mxu0 %v416
  %578 = vmatprep.subr.bf16.mxu0 %v414
  %579 = vmatpush1.bf16.msra.mxu0 %v413
  %580 = vmatprep.subr.bf16.mxu0 %v411
  %581 = vmatpush1.bf16.msra.mxu0 %v410
  %582 = vmatprep.subr.bf16.mxu0 %v408
  %583 = vmatpush1.bf16.msra.mxu0 %v407
  %584 = vmatprep.subr.bf16.mxu0 %v453
  %585 = vmatpush2.bf16.msra.mxu0 %v452
  %586 = vmatprep.subr.bf16.mxu0 %v450
  %587 = vmatpush2.bf16.msra.mxu0 %v449
  %588 = vmatprep.subr.bf16.mxu0 %v447
  %589 = vmatpush2.bf16.msra.mxu0 %v446
  %590 = vmatprep.subr.bf16.mxu0 %v444
  %591 = vmatpush2.bf16.msra.mxu0 %v443
  %592 = vmatprep.subr.bf16.mxu0 %v441
  %593 = vmatpush2.bf16.msra.mxu0 %v440
  %594 = vmatprep.subr.bf16.mxu0 %v438
  %595 = vmatpush2.bf16.msra.mxu0 %v437
  %596 = vmatprep.subr.bf16.mxu0 %v435
  %597 = vmatpush2.bf16.msra.mxu0 %v434
  %598 = vmatprep.subr.bf16.mxu0 %v432
  %599 = vmatpush2.bf16.msra.mxu0 %v431
  %600 = vmatprep.mubr.bf16.mxu0 %v44
  %601 = vmatmul.mubr.bf16.gmra.mxu0 %v43
  %v602 = vpop.f32.mrf.mxu0
  %v603 = vadd.f32 %v150, %v602
  %v604 = vpop.f32.mrf.mxu0
  %v605 = vadd.f32 %v154, %v604
  %v606 = vpop.f32.mrf.mxu0
  %v607 = vpop.f32.mrf.mxu0
  %608 = vdwg.mxu0
  %609 = vmatprep.subr.bf16.mxu0 %v477
  %610 = vmatpush1.bf16.msra.mxu0 %v476
  %611 = vmatprep.subr.bf16.mxu0 %v474
  %612 = vmatpush1.bf16.msra.mxu0 %v473
  %613 = vmatprep.subr.bf16.mxu0 %v471
  %614 = vmatpush1.bf16.msra.mxu0 %v470
  %615 = vmatprep.subr.bf16.mxu0 %v468
  %616 = vmatpush1.bf16.msra.mxu0 %v467
  %617 = vmatprep.subr.bf16.mxu0 %v465
  %618 = vmatpush1.bf16.msra.mxu0 %v464
  %619 = vmatprep.subr.bf16.mxu0 %v462
  %620 = vmatpush1.bf16.msra.mxu0 %v461
  %621 = vmatprep.subr.bf16.mxu0 %v459
  %622 = vmatpush1.bf16.msra.mxu0 %v458
  %623 = vmatprep.subr.bf16.mxu0 %v456
  %624 = vmatpush1.bf16.msra.mxu0 %v455
  %625 = vmatprep.subr.bf16.mxu0 0
  %626 = vmatpush2.bf16.msra.mxu0 0
  %627 = vmatprep.subr.bf16.mxu0 0
  %628 = vmatpush2.bf16.msra.mxu0 0
  %629 = vmatprep.subr.bf16.mxu0 0
  %630 = vmatpush2.bf16.msra.mxu0 0
  %631 = vmatprep.subr.bf16.mxu0 0
  %632 = vmatpush2.bf16.msra.mxu0 0
  %633 = vmatprep.subr.bf16.mxu0 0
  %634 = vmatpush2.bf16.msra.mxu0 0
  %635 = vmatprep.subr.bf16.mxu0 0
  %636 = vmatpush2.bf16.msra.mxu0 0
  %637 = vmatprep.subr.bf16.mxu0 0
  %638 = vmatpush2.bf16.msra.mxu0 0
  %639 = vmatprep.subr.bf16.mxu0 %v563
  %640 = vmatpush2.bf16.msra.mxu0 %v560
  %641 = vmatprep.mubr.bf16.mxu0 %v556
  %642 = vmatmul.mubr.bf16.gmra.mxu0 %v45
  %v643 = vpop.f32.mrf.mxu0
  %v644 = vadd.f32 %v603, %v643
  %v645 = vpop.f32.mrf.mxu0
  %v646 = vadd.f32 %v605, %v645
  %v647 = vpop.f32.mrf.mxu0
  %v648 = vpop.f32.mrf.mxu0
  %649 = vdwg.mxu0
  %650 = vmatprep.subr.bf16.mxu0 0
  %651 = vmatpush1.bf16.msra.mxu0 %v430
  %652 = vmatprep.subr.bf16.mxu0 0
  %653 = vmatpush1.bf16.msra.mxu0 %v427
  %654 = vmatprep.subr.bf16.mxu0 0
  %655 = vmatpush1.bf16.msra.mxu0 %v424
  %656 = vmatprep.subr.bf16.mxu0 0
  %657 = vmatpush1.bf16.msra.mxu0 %v421
  %658 = vmatprep.subr.bf16.mxu0 0
  %659 = vmatpush1.bf16.msra.mxu0 %v418
  %660 = vmatprep.subr.bf16.mxu0 0
  %661 = vmatpush1.bf16.msra.mxu0 %v415
  %662 = vmatprep.subr.bf16.mxu0 0
  %663 = vmatpush1.bf16.msra.mxu0 %v412
  %664 = vmatprep.subr.bf16.mxu0 0
  %665 = vmatpush1.bf16.msra.mxu0 %v409
  %666 = vmatprep.subr.bf16.mxu0 0
  %667 = vmatpush2.bf16.msra.mxu0 %v454
  %668 = vmatprep.subr.bf16.mxu0 0
  %669 = vmatpush2.bf16.msra.mxu0 %v451
  %670 = vmatprep.subr.bf16.mxu0 0
  %671 = vmatpush2.bf16.msra.mxu0 %v448
  %672 = vmatprep.subr.bf16.mxu0 0
  %673 = vmatpush2.bf16.msra.mxu0 %v445
  %674 = vmatprep.subr.bf16.mxu0 0
  %675 = vmatpush2.bf16.msra.mxu0 %v442
  %676 = vmatprep.subr.bf16.mxu0 0
  %677 = vmatpush2.bf16.msra.mxu0 %v439
  %678 = vmatprep.subr.bf16.mxu0 0
  %679 = vmatpush2.bf16.msra.mxu0 %v436
  %680 = vmatprep.subr.bf16.mxu0 0
  %681 = vmatpush2.bf16.msra.mxu0 %v433
  %682 = vmatprep.mubr.bf16.mxu0 %v44
  %683 = vmatmul.mubr.bf16.gmra.mxu0 %v43
  %v684 = vpop.f32.mrf.mxu0
  %v685 = vadd.f32 %v158, %v684
  %v686 = vpop.f32.mrf.mxu0
  %v687 = vpop.f32.mrf.mxu0
  %v688 = vpop.f32.mrf.mxu0
  %689 = vdwg.mxu0
  %690 = vmatprep.subr.bf16.mxu0 0
  %691 = vmatpush1.bf16.msra.mxu0 %v478
  %692 = vmatprep.subr.bf16.mxu0 0
  %693 = vmatpush1.bf16.msra.mxu0 %v475
  %694 = vmatprep.subr.bf16.mxu0 0
  %695 = vmatpush1.bf16.msra.mxu0 %v472
  %696 = vmatprep.subr.bf16.mxu0 0
  %697 = vmatpush1.bf16.msra.mxu0 %v469
  %698 = vmatprep.subr.bf16.mxu0 0
  %699 = vmatpush1.bf16.msra.mxu0 %v466
  %700 = vmatprep.subr.bf16.mxu0 0
  %701 = vmatpush1.bf16.msra.mxu0 %v463
  %702 = vmatprep.subr.bf16.mxu0 0
  %703 = vmatpush1.bf16.msra.mxu0 %v460
  %704 = vmatprep.subr.bf16.mxu0 0
  %705 = vmatpush1.bf16.msra.mxu0 %v457
  %706 = vmatprep.subr.bf16.mxu0 0
  %707 = vmatpush2.bf16.msra.mxu0 0
  %708 = vmatprep.subr.bf16.mxu0 0
  %709 = vmatpush2.bf16.msra.mxu0 0
  %710 = vmatprep.subr.bf16.mxu0 0
  %711 = vmatpush2.bf16.msra.mxu0 0
  %712 = vmatprep.subr.bf16.mxu0 0
  %713 = vmatpush2.bf16.msra.mxu0 0
  %714 = vmatprep.subr.bf16.mxu0 0
  %715 = vmatpush2.bf16.msra.mxu0 0
  %716 = vmatprep.subr.bf16.mxu0 0
  %717 = vmatpush2.bf16.msra.mxu0 0
  %718 = vmatprep.subr.bf16.mxu0 0
  %719 = vmatpush2.bf16.msra.mxu0 0
  %720 = vmatprep.subr.bf16.mxu0 0
  %721 = vmatpush2.bf16.msra.mxu0 %v566
  %722 = vmatprep.mubr.bf16.mxu0 %v556
  %723 = vmatmul.mubr.bf16.gmra.mxu0 %v45
  %v724 = vpop.f32.mrf.mxu0
  %v725 = vadd.f32 %v685, %v724
  %v726 = vpop.f32.mrf.mxu0
  %v727 = vpop.f32.mrf.mxu0
  %v728 = vpop.f32.mrf.mxu0
  %729 = vdwg.mxu0
  %v730 = vmax.f32 %v644, 0.0
  %v731 = vmax.f32 %v646, 0.0
  %v732 = vmax.f32 %v725, 0.0
  %v733 = vpack.c.bf16 %v730, %v730
  %v734 = vpack.c.bf16 %v731, %v731
  %v735 = vpack.c.bf16 %v732, %v732
  %v736 = vld [vmem:[%s3] sm:$0xf]
  %v737 = vld [vmem:[%s3 + $0x4] sm:$0xf]
  %v738 = vld [vmem:[%s3 + $0x8] sm:$0xf]
  %v739 = vld [vmem:[%s3 + $0xc] sm:$0xf]
  %v740 = vld [vmem:[%s3 + $0x10] sm:$0xf]
  %v741 = vld [vmem:[%s3 + $0x14] sm:$0xf]
  %v742 = vld [vmem:[%s3 + $0x18] sm:$0xf]
  %v743 = vld [vmem:[%s3 + $0x1c] sm:$0xf]
  %v744 = vld [vmem:[%s3 + $0x20] sm:$0xf]
  %v745 = vld [vmem:[%s3 + $0x24] sm:$0xf]
  %v746 = vld [vmem:[%s3 + $0x28] sm:$0xf]
  %v747 = vld [vmem:[%s3 + $0x2c] sm:$0xf]
  %v748 = vld [vmem:[%s3 + $0x30] sm:$0xf]
  %v749 = vld [vmem:[%s3 + $0x34] sm:$0xf]
  %v750 = vld [vmem:[%s3 + $0x38] sm:$0xf]
  %v751 = vld [vmem:[%s3 + $0x3c] sm:$0xf]
  %v752 = vld [vmem:[%s3 + $0x40] sm:$0xf]
  %v753 = vld [vmem:[%s3 + $0x44] sm:$0xf]
  %v754 = vld [vmem:[%s3 + $0x48] sm:$0xf]
  %v755 = vld [vmem:[%s3 + $0x4c] sm:$0xf]
  %v756 = vld [vmem:[%s3 + $0x50] sm:$0xf]
  %v757 = vld [vmem:[%s3 + $0x54] sm:$0xf]
  %v758 = vld [vmem:[%s3 + $0x58] sm:$0xf]
  %v759 = vld [vmem:[%s3 + $0x5c] sm:$0xf]
  %v760 = vld [vmem:[%s3 + $0x60] sm:$0xf]
  %v761 = vld [vmem:[%s3 + $0x64] sm:$0xf]
  %v762 = vld [vmem:[%s3 + $0x68] sm:$0xf]
  %v763 = vld [vmem:[%s3 + $0x6c] sm:$0xf]
  %v764 = vld [vmem:[%s3 + $0x70] sm:$0xf]
  %v765 = vld [vmem:[%s3 + $0x74] sm:$0xf]
  %v766 = vld [vmem:[%s3 + $0x78] sm:$0xf]
  %v767 = vld [vmem:[%s3 + $0x7c] sm:$0xf]
  %v768 = vld [vmem:[%s3 + $0x80] sm:$0xf]
  %v769 = vld [vmem:[%s3 + $0x84] sm:$0xf]
  %v770 = vld [vmem:[%s3 + $0x88] sm:$0xf]
  %v771 = vld [vmem:[%s3 + $0x8c] sm:$0xf]
  %v772 = vld [vmem:[%s3 + $0x90] sm:$0xf]
  %v773 = vld [vmem:[%s3 + $0x94] sm:$0xf]
  %v774 = vld [vmem:[%s3 + $0x98] sm:$0xf]
  %v775 = vld [vmem:[%s3 + $0x9c] sm:$0xf]
  %v776 = vld [vmem:[%s3 + $0xa0] sm:$0xf]
  %v777 = vld [vmem:[%s3 + $0xa4] sm:$0xf]
  %v778 = vld [vmem:[%s3 + $0xa8] sm:$0xf]
  %v779 = vld [vmem:[%s3 + $0xac] sm:$0xf]
  %v780 = vld [vmem:[%s3 + $0xb0] sm:$0xf]
  %v781 = vld [vmem:[%s3 + $0xb4] sm:$0xf]
  %v782 = vld [vmem:[%s3 + $0xb8] sm:$0xf]
  %v783 = vld [vmem:[%s3 + $0xbc] sm:$0xf]
  %v784 = vld [vmem:[%s4] sm:$0x1]
  %v786 = vlaneseq
  %v787 = vshrl.u32 %v786, 7
  %v788 = vsub.s32 0, %v787
  %v789 = vrot.slane %v784, %v788
  %v839 = vunpack.c.l.b16 %v736
  %v840 = vunpack.c.l.b16 %v737
  %v841 = vunpack.c.l.b16 %v738
  %v842 = vunpack.c.l.b16 %v739
  %v843 = vunpack.c.l.b16 %v740
  %v844 = vunpack.c.l.b16 %v741
  %v845 = vunpack.c.l.b16 %v742
  %v846 = vunpack.c.l.b16 %v743
  %v847 = vunpack.c.l.b16 %v744
  %v848 = vunpack.c.l.b16 %v745
  %v849 = vunpack.c.l.b16 %v746
  %v850 = vunpack.c.l.b16 %v747
  %v851 = vunpack.c.l.b16 %v748
  %v852 = vunpack.c.l.b16 %v749
  %v853 = vunpack.c.l.b16 %v750
  %v854 = vunpack.c.l.b16 %v751
  %v855 = vunpack.c.l.b16 %v752
  %v856 = vunpack.c.l.b16 %v753
  %v857 = vunpack.c.l.b16 %v754
  %v858 = vunpack.c.l.b16 %v755
  %v859 = vunpack.c.l.b16 %v756
  %v860 = vunpack.c.l.b16 %v757
  %v861 = vunpack.c.l.b16 %v758
  %v862 = vunpack.c.l.b16 %v759
  %v863 = vunpack.c.l.b16 %v760
  %v864 = vunpack.c.l.b16 %v761
  %v865 = vunpack.c.l.b16 %v762
  %v866 = vunpack.c.l.b16 %v763
  %v867 = vunpack.c.l.b16 %v764
  %v868 = vunpack.c.l.b16 %v765
  %v869 = vunpack.c.l.b16 %v766
  %v870 = vunpack.c.l.b16 %v767
  %v871 = vunpack.c.l.b16 %v768
  %v872 = vunpack.c.l.b16 %v769
  %v873 = vunpack.c.l.b16 %v770
  %v874 = vunpack.c.l.b16 %v771
  %v875 = vunpack.c.l.b16 %v772
  %v876 = vunpack.c.l.b16 %v773
  %v877 = vunpack.c.l.b16 %v774
  %v878 = vunpack.c.l.b16 %v775
  %v879 = vunpack.c.l.b16 %v776
  %v880 = vunpack.c.l.b16 %v777
  %v881 = vunpack.c.l.b16 %v778
  %v882 = vunpack.c.l.b16 %v779
  %v883 = vunpack.c.l.b16 %v780
  %v884 = vunpack.c.l.b16 %v781
  %v885 = vunpack.c.l.b16 %v782
  %v886 = vunpack.c.l.b16 %v783
  %v887 = vpack.c.b16 %v840, %v839
  %v888 = vpack.c.b16 %v842, %v841
  %v889 = vpack.c.b16 %v844, %v843
  %v890 = vpack.c.b16 %v846, %v845
  %v891 = vpack.c.b16 %v848, %v847
  %v892 = vpack.c.b16 %v850, %v849
  %v893 = vpack.c.b16 %v852, %v851
  %v894 = vpack.c.b16 %v854, %v853
  %v895 = vpack.c.b16 %v856, %v855
  %v896 = vpack.c.b16 %v858, %v857
  %v897 = vpack.c.b16 %v860, %v859
  %v898 = vpack.c.b16 %v862, %v861
  %v899 = vpack.c.b16 %v864, %v863
  %v900 = vpack.c.b16 %v866, %v865
  %v901 = vpack.c.b16 %v868, %v867
  %v902 = vpack.c.b16 %v870, %v869
  %v903 = vpack.c.b16 %v872, %v871
  %v904 = vpack.c.b16 %v874, %v873
  %v905 = vpack.c.b16 %v876, %v875
  %v906 = vpack.c.b16 %v878, %v877
  %v907 = vpack.c.b16 %v880, %v879
  %v908 = vpack.c.b16 %v882, %v881
  %v909 = vpack.c.b16 %v884, %v883
  %v910 = vpack.c.b16 %v886, %v885
  %935 = vmatprep.subr.bf16.mxu0 0
  %936 = vmatpush1.bf16.msra.mxu0 %v894
  %937 = vmatprep.subr.bf16.mxu0 0
  %938 = vmatpush1.bf16.msra.mxu0 %v893
  %939 = vmatprep.subr.bf16.mxu0 0
  %940 = vmatpush1.bf16.msra.mxu0 %v892
  %941 = vmatprep.subr.bf16.mxu0 0
  %942 = vmatpush1.bf16.msra.mxu0 %v891
  %943 = vmatprep.subr.bf16.mxu0 0
  %944 = vmatpush1.bf16.msra.mxu0 %v890
  %945 = vmatprep.subr.bf16.mxu0 0
  %946 = vmatpush1.bf16.msra.mxu0 %v889
  %947 = vmatprep.subr.bf16.mxu0 0
  %948 = vmatpush1.bf16.msra.mxu0 %v888
  %949 = vmatprep.subr.bf16.mxu0 0
  %950 = vmatpush1.bf16.msra.mxu0 %v887
  %951 = vmatprep.subr.bf16.mxu0 0
  %952 = vmatpush2.bf16.msra.mxu0 %v902
  %953 = vmatprep.subr.bf16.mxu0 0
  %954 = vmatpush2.bf16.msra.mxu0 %v901
  %955 = vmatprep.subr.bf16.mxu0 0
  %956 = vmatpush2.bf16.msra.mxu0 %v900
  %957 = vmatprep.subr.bf16.mxu0 0
  %958 = vmatpush2.bf16.msra.mxu0 %v899
  %959 = vmatprep.subr.bf16.mxu0 0
  %960 = vmatpush2.bf16.msra.mxu0 %v898
  %961 = vmatprep.subr.bf16.mxu0 0
  %962 = vmatpush2.bf16.msra.mxu0 %v897
  %963 = vmatprep.subr.bf16.mxu0 0
  %964 = vmatpush2.bf16.msra.mxu0 %v896
  %965 = vmatprep.subr.bf16.mxu0 0
  %966 = vmatpush2.bf16.msra.mxu0 %v895
  %967 = vmatprep.mubr.bf16.mxu0 %v734
  %968 = vmatmul.mubr.bf16.gmra.mxu0 %v733
  %v969 = vpop.f32.mrf.mxu0
  %v970 = vadd.f32 %v789, %v969
  %v971 = vpop.f32.mrf.mxu0
  %v972 = vpop.f32.mrf.mxu0
  %v973 = vpop.f32.mrf.mxu0
  %974 = vdwg.mxu0
  %975 = vmatprep.subr.bf16.mxu0 0
  %976 = vmatpush1.bf16.msra.mxu0 %v910
  %977 = vmatprep.subr.bf16.mxu0 0
  %978 = vmatpush1.bf16.msra.mxu0 %v909
  %979 = vmatprep.subr.bf16.mxu0 0
  %980 = vmatpush1.bf16.msra.mxu0 %v908
  %981 = vmatprep.subr.bf16.mxu0 0
  %982 = vmatpush1.bf16.msra.mxu0 %v907
  %983 = vmatprep.subr.bf16.mxu0 0
  %984 = vmatpush1.bf16.msra.mxu0 %v906
  %985 = vmatprep.subr.bf16.mxu0 0
  %986 = vmatpush1.bf16.msra.mxu0 %v905
  %987 = vmatprep.subr.bf16.mxu0 0
  %988 = vmatpush1.bf16.msra.mxu0 %v904
  %989 = vmatprep.subr.bf16.mxu0 0
  %990 = vmatpush1.bf16.msra.mxu0 %v903
  %991 = vmatprep.subr.bf16.mxu0 0
  %992 = vmatpush2.bf16.msra.mxu0 0
  %993 = vmatprep.subr.bf16.mxu0 0
  %994 = vmatpush2.bf16.msra.mxu0 0
  %995 = vmatprep.subr.bf16.mxu0 0
  %996 = vmatpush2.bf16.msra.mxu0 0
  %997 = vmatprep.subr.bf16.mxu0 0
  %998 = vmatpush2.bf16.msra.mxu0 0
  %999 = vmatprep.subr.bf16.mxu0 0
  %1000 = vmatpush2.bf16.msra.mxu0 0
  %1001 = vmatprep.subr.bf16.mxu0 0
  %1002 = vmatpush2.bf16.msra.mxu0 0
  %1003 = vmatprep.subr.bf16.mxu0 0
  %1004 = vmatpush2.bf16.msra.mxu0 0
  %1005 = vmatprep.subr.bf16.mxu0 0
  %1006 = vmatpush2.bf16.msra.mxu0 0
  %1007 = vmatprep.mubr.bf16.mxu0 0
  %1008 = vmatmul.mubr.bf16.gmra.mxu0 %v735
  %v1009 = vpop.f32.mrf.mxu0
  %v1010 = vadd.f32 %v970, %v1009
  %v1011 = vpop.f32.mrf.mxu0
  %v1012 = vpop.f32.mrf.mxu0
  %v1013 = vpop.f32.mrf.mxu0
  %1014 = vdwg.mxu0
  %v1015 = vmax.f32 %v1010, 0.0
  %v1016 = vpack.c.bf16 %v1015, %v1015
  %v1017 = vld [vmem:[%s5] sm:$0xf]
  %v1018 = vld [vmem:[%s5 + $0x4] sm:$0xf]
  %v1019 = vld [vmem:[%s5 + $0x8] sm:$0xf]
  %v1020 = vld [vmem:[%s5 + $0xc] sm:$0xf]
  %v1021 = vld [vmem:[%s5 + $0x10] sm:$0xf]
  %v1022 = vld [vmem:[%s5 + $0x14] sm:$0xf]
  %v1023 = vld [vmem:[%s5 + $0x18] sm:$0xf]
  %v1024 = vld [vmem:[%s5 + $0x1c] sm:$0xf]
  %v1025 = vld [vmem:[%s5 + $0x20] sm:$0xf]
  %v1026 = vld [vmem:[%s5 + $0x24] sm:$0xf]
  %v1027 = vld [vmem:[%s5 + $0x28] sm:$0xf]
  %v1028 = vld [vmem:[%s5 + $0x2c] sm:$0xf]
  %v1029 = vld [vmem:[%s5 + $0x30] sm:$0xf]
  %v1030 = vld [vmem:[%s5 + $0x34] sm:$0xf]
  %v1031 = vld [vmem:[%s5 + $0x38] sm:$0xf]
  %v1032 = vld [vmem:[%s5 + $0x3c] sm:$0xf]
  %v1033 = vld [vmem:[%s6] sm:$0x1]
  %v1035 = vlaneseq
  %v1036 = vshrl.u32 %v1035, 7
  %v1037 = vsub.s32 0, %v1036
  %v1038 = vrot.slane %v1033, %v1037
  %v1056 = vunpack.c.l.b16 %v1017
  %v1057 = vunpack.c.l.b16 %v1018
  %v1058 = vunpack.c.l.b16 %v1019
  %v1059 = vunpack.c.l.b16 %v1020
  %v1060 = vunpack.c.l.b16 %v1021
  %v1061 = vunpack.c.l.b16 %v1022
  %v1062 = vunpack.c.l.b16 %v1023
  %v1063 = vunpack.c.l.b16 %v1024
  %v1064 = vunpack.c.l.b16 %v1025
  %v1065 = vunpack.c.l.b16 %v1026
  %v1066 = vunpack.c.l.b16 %v1027
  %v1067 = vunpack.c.l.b16 %v1028
  %v1068 = vunpack.c.l.b16 %v1029
  %v1069 = vunpack.c.l.b16 %v1030
  %v1070 = vunpack.c.l.b16 %v1031
  %v1071 = vunpack.c.l.b16 %v1032
  %v1072 = vpack.c.b16 %v1057, %v1056
  %v1073 = vpack.c.b16 %v1059, %v1058
  %v1074 = vpack.c.b16 %v1061, %v1060
  %v1075 = vpack.c.b16 %v1063, %v1062
  %v1076 = vpack.c.b16 %v1065, %v1064
  %v1077 = vpack.c.b16 %v1067, %v1066
  %v1078 = vpack.c.b16 %v1069, %v1068
  %v1079 = vpack.c.b16 %v1071, %v1070
  %1088 = vmatprep.subr.bf16.mxu0 0
  %1089 = vmatpush1.bf16.msra.mxu0 %v1079
  %1090 = vmatprep.subr.bf16.mxu0 0
  %1091 = vmatpush1.bf16.msra.mxu0 %v1078
  %1092 = vmatprep.subr.bf16.mxu0 0
  %1093 = vmatpush1.bf16.msra.mxu0 %v1077
  %1094 = vmatprep.subr.bf16.mxu0 0
  %1095 = vmatpush1.bf16.msra.mxu0 %v1076
  %1096 = vmatprep.subr.bf16.mxu0 0
  %1097 = vmatpush1.bf16.msra.mxu0 %v1075
  %1098 = vmatprep.subr.bf16.mxu0 0
  %1099 = vmatpush1.bf16.msra.mxu0 %v1074
  %1100 = vmatprep.subr.bf16.mxu0 0
  %1101 = vmatpush1.bf16.msra.mxu0 %v1073
  %1102 = vmatprep.subr.bf16.mxu0 0
  %1103 = vmatpush1.bf16.msra.mxu0 %v1072
  %1104 = vmatprep.subr.bf16.mxu0 0
  %1105 = vmatpush2.bf16.msra.mxu0 0
  %1106 = vmatprep.subr.bf16.mxu0 0
  %1107 = vmatpush2.bf16.msra.mxu0 0
  %1108 = vmatprep.subr.bf16.mxu0 0
  %1109 = vmatpush2.bf16.msra.mxu0 0
  %1110 = vmatprep.subr.bf16.mxu0 0
  %1111 = vmatpush2.bf16.msra.mxu0 0
  %1112 = vmatprep.subr.bf16.mxu0 0
  %1113 = vmatpush2.bf16.msra.mxu0 0
  %1114 = vmatprep.subr.bf16.mxu0 0
  %1115 = vmatpush2.bf16.msra.mxu0 0
  %1116 = vmatprep.subr.bf16.mxu0 0
  %1117 = vmatpush2.bf16.msra.mxu0 0
  %1118 = vmatprep.subr.bf16.mxu0 0
  %1119 = vmatpush2.bf16.msra.mxu0 0
  %1120 = vmatprep.mubr.bf16.mxu0 0
  %1121 = vmatmul.mubr.bf16.gmra.mxu0 %v1016
  %v1122 = vpop.f32.mrf.mxu0
  %v1123 = vadd.f32 %v1038, %v1122
  %v1124 = vpop.f32.mrf.mxu0
  %v1125 = vpop.f32.mrf.mxu0
  %v1126 = vpop.f32.mrf.mxu0
  %1127 = vdwg.mxu0
  %v1128 = vmax.f32 %v1123, 0.0
  %v1129 = vpack.c.bf16 %v1128, %v1128
  %v1130 = vld [vmem:[%s7] sm:$0xf]
  %v1131 = vld [vmem:[%s7 + $0x4] sm:$0xf]
  %v1132 = vld [vmem:[%s7 + $0x8] sm:$0xf]
  %v1133 = vld [vmem:[%s7 + $0xc] sm:$0xf]
  %v1134 = vld [vmem:[%s7 + $0x10] sm:$0xf]
  %v1135 = vld [vmem:[%s7 + $0x14] sm:$0xf]
  %v1136 = vld [vmem:[%s7 + $0x18] sm:$0xf]
  %v1137 = vld [vmem:[%s7 + $0x1c] sm:$0xf]
  %v1138 = vld [vmem:[%s7 + $0x20] sm:$0xf]
  %v1139 = vld [vmem:[%s7 + $0x24] sm:$0xf]
  %v1140 = vld [vmem:[%s7 + $0x28] sm:$0xf]
  %v1141 = vld [vmem:[%s7 + $0x2c] sm:$0xf]
  %v1142 = vld [vmem:[%s7 + $0x30] sm:$0xf]
  %v1143 = vld [vmem:[%s7 + $0x34] sm:$0xf]
  %v1144 = vld [vmem:[%s7 + $0x38] sm:$0xf]
  %v1145 = vld [vmem:[%s7 + $0x3c] sm:$0xf]
  %v1146 = vld [vmem:[%s8] sm:$0x1]
  %v1148 = vlaneseq
  %v1149 = vshrl.u32 %v1148, 7
  %v1150 = vsub.s32 0, %v1149
  %v1151 = vrot.slane %v1146, %v1150
  %v1169 = vunpack.c.l.b16 %v1130
  %v1170 = vunpack.c.l.b16 %v1131
  %v1171 = vunpack.c.l.b16 %v1132
  %v1172 = vunpack.c.l.b16 %v1133
  %v1173 = vunpack.c.l.b16 %v1134
  %v1174 = vunpack.c.l.b16 %v1135
  %v1175 = vunpack.c.l.b16 %v1136
  %v1176 = vunpack.c.l.b16 %v1137
  %v1177 = vunpack.c.l.b16 %v1138
  %v1178 = vunpack.c.l.b16 %v1139
  %v1179 = vunpack.c.l.b16 %v1140
  %v1180 = vunpack.c.l.b16 %v1141
  %v1181 = vunpack.c.l.b16 %v1142
  %v1182 = vunpack.c.l.b16 %v1143
  %v1183 = vunpack.c.l.b16 %v1144
  %v1184 = vunpack.c.l.b16 %v1145
  %v1185 = vpack.c.b16 %v1170, %v1169
  %v1186 = vpack.c.b16 %v1172, %v1171
  %v1187 = vpack.c.b16 %v1174, %v1173
  %v1188 = vpack.c.b16 %v1176, %v1175
  %v1189 = vpack.c.b16 %v1178, %v1177
  %v1190 = vpack.c.b16 %v1180, %v1179
  %v1191 = vpack.c.b16 %v1182, %v1181
  %v1192 = vpack.c.b16 %v1184, %v1183
  %1201 = vmatprep.subr.bf16.mxu0 0
  %1202 = vmatpush1.bf16.msra.mxu0 %v1192
  %1203 = vmatprep.subr.bf16.mxu0 0
  %1204 = vmatpush1.bf16.msra.mxu0 %v1191
  %1205 = vmatprep.subr.bf16.mxu0 0
  %1206 = vmatpush1.bf16.msra.mxu0 %v1190
  %1207 = vmatprep.subr.bf16.mxu0 0
  %1208 = vmatpush1.bf16.msra.mxu0 %v1189
  %1209 = vmatprep.subr.bf16.mxu0 0
  %1210 = vmatpush1.bf16.msra.mxu0 %v1188
  %1211 = vmatprep.subr.bf16.mxu0 0
  %1212 = vmatpush1.bf16.msra.mxu0 %v1187
  %1213 = vmatprep.subr.bf16.mxu0 0
  %1214 = vmatpush1.bf16.msra.mxu0 %v1186
  %1215 = vmatprep.subr.bf16.mxu0 0
  %1216 = vmatpush1.bf16.msra.mxu0 %v1185
  %1217 = vmatprep.subr.bf16.mxu0 0
  %1218 = vmatpush2.bf16.msra.mxu0 0
  %1219 = vmatprep.subr.bf16.mxu0 0
  %1220 = vmatpush2.bf16.msra.mxu0 0
  %1221 = vmatprep.subr.bf16.mxu0 0
  %1222 = vmatpush2.bf16.msra.mxu0 0
  %1223 = vmatprep.subr.bf16.mxu0 0
  %1224 = vmatpush2.bf16.msra.mxu0 0
  %1225 = vmatprep.subr.bf16.mxu0 0
  %1226 = vmatpush2.bf16.msra.mxu0 0
  %1227 = vmatprep.subr.bf16.mxu0 0
  %1228 = vmatpush2.bf16.msra.mxu0 0
  %1229 = vmatprep.subr.bf16.mxu0 0
  %1230 = vmatpush2.bf16.msra.mxu0 0
  %1231 = vmatprep.subr.bf16.mxu0 0
  %1232 = vmatpush2.bf16.msra.mxu0 0
  %1233 = vmatprep.mubr.bf16.mxu0 0
  %1234 = vmatmul.mubr.bf16.gmra.mxu0 %v1129
  %v1235 = vpop.f32.mrf.mxu0
  %v1236 = vadd.f32 %v1151, %v1235
  %v1237 = vpop.f32.mrf.mxu0
  %v1238 = vpop.f32.mrf.mxu0
  %v1239 = vpop.f32.mrf.mxu0
  %1240 = vdwg.mxu0
  %v1241 = vmax.f32 %v1236, 0.0
  %v1242 = vpack.c.bf16 %v1241, %v1241
  %v1243 = vld [vmem:[%s9] sm:$0xf]
  %v1244 = vld [vmem:[%s9 + $0x4] sm:$0xf]
  %v1245 = vld [vmem:[%s9 + $0x8] sm:$0xf]
  %v1246 = vld [vmem:[%s9 + $0xc] sm:$0xf]
  %v1247 = vld [vmem:[%s9 + $0x10] sm:$0xf]
  %v1248 = vld [vmem:[%s9 + $0x14] sm:$0xf]
  %v1249 = vld [vmem:[%s9 + $0x18] sm:$0xf]
  %v1250 = vld [vmem:[%s9 + $0x1c] sm:$0xf]
  %v1251 = vld [vmem:[%s9 + $0x20] sm:$0xf]
  %v1252 = vld [vmem:[%s9 + $0x24] sm:$0xf]
  %v1253 = vld [vmem:[%s9 + $0x28] sm:$0xf]
  %v1254 = vld [vmem:[%s9 + $0x2c] sm:$0xf]
  %v1255 = vld [vmem:[%s9 + $0x30] sm:$0xf]
  %v1256 = vld [vmem:[%s9 + $0x34] sm:$0xf]
  %v1257 = vld [vmem:[%s9 + $0x38] sm:$0xf]
  %v1258 = vld [vmem:[%s9 + $0x3c] sm:$0xf]
  %v1259 = vld [vmem:[%s10] sm:$0x1]
  %v1261 = vlaneseq
  %v1262 = vshrl.u32 %v1261, 7
  %v1263 = vsub.s32 0, %v1262
  %v1264 = vrot.slane %v1259, %v1263
  %v1282 = vunpack.c.l.b16 %v1243
  %v1283 = vunpack.c.l.b16 %v1244
  %v1284 = vunpack.c.l.b16 %v1245
  %v1285 = vunpack.c.l.b16 %v1246
  %v1286 = vunpack.c.l.b16 %v1247
  %v1287 = vunpack.c.l.b16 %v1248
  %v1288 = vunpack.c.l.b16 %v1249
  %v1289 = vunpack.c.l.b16 %v1250
  %v1290 = vunpack.c.l.b16 %v1251
  %v1291 = vunpack.c.l.b16 %v1252
  %v1292 = vunpack.c.l.b16 %v1253
  %v1293 = vunpack.c.l.b16 %v1254
  %v1294 = vunpack.c.l.b16 %v1255
  %v1295 = vunpack.c.l.b16 %v1256
  %v1296 = vunpack.c.l.b16 %v1257
  %v1297 = vunpack.c.l.b16 %v1258
  %v1298 = vpack.c.b16 %v1283, %v1282
  %v1299 = vpack.c.b16 %v1285, %v1284
  %v1300 = vpack.c.b16 %v1287, %v1286
  %v1301 = vpack.c.b16 %v1289, %v1288
  %v1302 = vpack.c.b16 %v1291, %v1290
  %v1303 = vpack.c.b16 %v1293, %v1292
  %v1304 = vpack.c.b16 %v1295, %v1294
  %v1305 = vpack.c.b16 %v1297, %v1296
  %1314 = vmatprep.subr.bf16.mxu0 0
  %1315 = vmatpush1.bf16.msra.mxu0 %v1305
  %1316 = vmatprep.subr.bf16.mxu0 0
  %1317 = vmatpush1.bf16.msra.mxu0 %v1304
  %1318 = vmatprep.subr.bf16.mxu0 0
  %1319 = vmatpush1.bf16.msra.mxu0 %v1303
  %1320 = vmatprep.subr.bf16.mxu0 0
  %1321 = vmatpush1.bf16.msra.mxu0 %v1302
  %1322 = vmatprep.subr.bf16.mxu0 0
  %1323 = vmatpush1.bf16.msra.mxu0 %v1301
  %1324 = vmatprep.subr.bf16.mxu0 0
  %1325 = vmatpush1.bf16.msra.mxu0 %v1300
  %1326 = vmatprep.subr.bf16.mxu0 0
  %1327 = vmatpush1.bf16.msra.mxu0 %v1299
  %1328 = vmatprep.subr.bf16.mxu0 0
  %1329 = vmatpush1.bf16.msra.mxu0 %v1298
  %1330 = vmatprep.subr.bf16.mxu0 0
  %1331 = vmatpush2.bf16.msra.mxu0 0
  %1332 = vmatprep.subr.bf16.mxu0 0
  %1333 = vmatpush2.bf16.msra.mxu0 0
  %1334 = vmatprep.subr.bf16.mxu0 0
  %1335 = vmatpush2.bf16.msra.mxu0 0
  %1336 = vmatprep.subr.bf16.mxu0 0
  %1337 = vmatpush2.bf16.msra.mxu0 0
  %1338 = vmatprep.subr.bf16.mxu0 0
  %1339 = vmatpush2.bf16.msra.mxu0 0
  %1340 = vmatprep.subr.bf16.mxu0 0
  %1341 = vmatpush2.bf16.msra.mxu0 0
  %1342 = vmatprep.subr.bf16.mxu0 0
  %1343 = vmatpush2.bf16.msra.mxu0 0
  %1344 = vmatprep.subr.bf16.mxu0 0
  %1345 = vmatpush2.bf16.msra.mxu0 0
  %1346 = vmatprep.mubr.bf16.mxu0 0
  %1347 = vmatmul.mubr.bf16.gmra.mxu0 %v1242
  %v1348 = vpop.f32.mrf.mxu0
  %v1349 = vadd.f32 %v1264, %v1348
  %v1350 = vpop.f32.mrf.mxu0
  %v1351 = vpop.f32.mrf.mxu0
  %v1352 = vpop.f32.mrf.mxu0
  %1353 = vdwg.mxu0
  %v1354 = vpack.c.bf16 %v1349, %v1349
  %1355 = vst [vmem:[%s11] sm:$0xf] %v1354
  // Predicated region
  $region46: #{mlp_forward.1} parent=0 // pred_check
    _
  $region47: #{mlp_forward.1} parent=0 // pred_check_branch
    %1357 = sbr.rel (0) target = $region49
  $region48: #{mlp_forward.1} parent=0 // pred_region
    _
  $region49: #{mlp_forward.1} parent=0 // pred_fallthru
    _
  // Predicated region
  $region50: #{mlp_forward.1} parent=0 // pred_check
    _
  $region51: #{mlp_forward.1} parent=0 // pred_check_branch
    %1359 = sbr.rel (0) target = $region53
  $region52: #{mlp_forward.1} parent=0 // pred_region
    _
  $region53: #{mlp_forward.1} parent=0 // pred_fallthru
    _

</llo_original>
